<compile_context>
chip_gen: v7x
topology: tpu7x:2x2x1
jax: 0.10.0
libtpu: 0.0.40
codegen_flags: <defaults>
</compile_context>

<pallas_src>
import math

import jax
import jax.numpy as jnp
from jax.experimental import pallas as pl
from jax.experimental.pallas import tpu as pltpu


def _lowpass_2d(weights):
    """CreateLowpassKernel: outer product of the 1-D taps, normalized to sum 1.

    Returned as nested Python floats so the taps can be baked into the kernel as
    compile-time constants / folded into the 1x1 weight.
    """
    taps = [float(v) for v in weights]
    k2 = [[a * b for b in taps] for a in taps]
    s = sum(sum(row) for row in k2)
    return [[v / s for v in row] for row in k2]


def _pick_row_tile(Ho, hh, Wh, Cin, itemsize, requested=None, budget_bytes=4 << 20):
    """Output rows per grid block (must divide Ho).  Sized so the input block
    (4 phases x (tr+hh) x Wh x Cin) stays <= budget_bytes, i.e. comfortably
    double-buffered even inside v7x's 64 MiB physical VMEM."""
    if requested is None:
        per_row = max(1, 4 * Wh * Cin * itemsize)
        tr = max(1, min(Ho, budget_bytes // per_row - hh))
    else:
        tr = max(1, min(int(requested), Ho))
    while Ho % tr:
        tr -= 1
    return tr


def _make_kernel(fw, tr, wo, cin, cout, f2d, has_mix):
    hwo = tr * wo

    def kernel(*refs):
        if has_mix:
            xb_ref, wt_ref, o_ref = refs
        else:
            xb_ref, o_ref = refs
        acc = jnp.zeros((hwo, cout), jnp.float32)
        for p in range(fw):
            for q in range(fw):
                ph = (p % 2) * 2 + (q % 2)
                # (tr, wo, cin) window of this tap's phase plane (static slices;
                # channels stay on lanes, no strided/decimating access needed).
                tap = xb_ref[ph, p // 2:p // 2 + tr, q // 2:q // 2 + wo, :]
                tap = tap.reshape(hwo, cin)
                if has_mix:
                    # FIR tap already folded into the weight -> pure MXU work.
                    acc = acc + jnp.dot(tap, wt_ref[p * fw + q],
                                        preferred_element_type=jnp.float32)
                else:
                    # Cin == Cout (no LinearLayer): depthwise only; scale by the
                    # compile-time tap constant, no identity matmul / weight DMA.
                    acc = acc + tap.astype(jnp.float32) * f2d[p][q]
        o_ref[...] = acc.astype(o_ref.dtype)

    return kernel


def downsample_layer(x, resampling_filter, w=None, *, row_tile=None,
                     compute_dtype=None):
    """DownsampleLayer.forward.

    x: (N, Cin, H, W) NCHW.  w: (Cout, Cin) 1x1-conv weight or None when
    InputChannels == OutputChannels.  compute_dtype: dtype fed to the MXU
    (e.g. jnp.bfloat16 on v6e/v7x to halve HBM traffic); accumulation is f32.
    """
    N, Cin, H, W = x.shape
    if compute_dtype is None:
        compute_dtype = x.dtype
    compute_dtype = jnp.dtype(compute_dtype)

    f2d = _lowpass_2d(resampling_filter)
    fw = len(f2d)
    K = fw * fw
    # upfirdn2d.downsample2d(down=2) padding.  Default R3GAN filters are
    # symmetric, so correlation == convolution.
    # TODO(synk): an asymmetric ResamplingFilter would need an explicit tap flip
    # to match upfirdn2d's true-convolution semantics.
    pad0 = (fw - 2 + 1) // 2
    pad1 = (fw - 2) // 2
    Ho = (H + pad0 + pad1 - fw) // 2 + 1
    Wo = (W + pad0 + pad1 - fw) // 2 + 1

    hh = (fw - 1) // 2            # largest tap offset in phase-row/col units
    Hh, Wh = Ho + hh, Wo + hh     # phase-plane extents
    Hp2, Wp2 = 2 * Hh, 2 * Wh     # even, phase-aligned padded input extents
    pad_h_hi = Hp2 - H - pad0
    pad_w_hi = Wp2 - W - pad0
    assert pad_h_hi >= 0 and pad_w_hi >= 0

    has_mix = w is not None
    Cout = int(w.shape[0]) if has_mix else Cin

    # --- wrapper prep: ONE cheap reshuffle (pad + phase split), no 9x im2col ---
    xc = x.astype(compute_dtype)
    xc = jnp.pad(xc, ((0, 0), (0, 0), (pad0, pad_h_hi), (pad0, pad_w_hi)))
    xc = jnp.transpose(xc, (0, 2, 3, 1))                       # NHWC
    xc = xc.reshape(N, Hh, 2, Wh, 2, Cin)                      # even/odd rows & cols
    xph = jnp.transpose(xc, (0, 2, 4, 1, 3, 5)).reshape(N, 4, Hh, Wh, Cin)

    itemsize = compute_dtype.itemsize
    TR = _pick_row_tile(Ho, hh, Wh, Cin, itemsize, requested=row_tile)
    R = Ho // TR
    TRh = TR + hh
    if R == 1:
        xb = xph[:, None]                                      # (N, 1, 4, Hh, Wh, Cin)
    else:
        # Each row block carries its own hh-row halo (~hh/TR duplication).
        xb = jnp.stack(
            [jax.lax.slice_in_dim(xph, rb * TR, rb * TR + TRh, axis=2)
             for rb in range(R)], axis=1)                      # (N, R, 4, TRh, Wh, Cin)

    in_specs = [
        pl.BlockSpec((pl.Squeezed(), pl.Squeezed(), 4, TRh, Wh, Cin),
                     lambda n, rb: (n, rb, 0, 0, 0, 0)),
    ]
    args = [xb]
    if has_mix:
        # Fold the FIR into the 1x1-conv weight: W_taps[t] = f[t] * W^T.
        f_flat = jnp.asarray([f2d[p][q] for p in range(fw) for q in range(fw)],
                             jnp.float32).reshape(K, 1, 1)
        w_taps = (f_flat * jnp.transpose(w).astype(jnp.float32)[None]
                  ).astype(compute_dtype)                      # (K, Cin, Cout)
        in_specs.append(pl.BlockSpec((K, Cin, Cout), lambda n, rb: (0, 0, 0)))
        args.append(w_taps)

    out_specs = pl.BlockSpec((pl.Squeezed(), pl.Squeezed(), TR * Wo, Cout),
                             lambda n, rb: (n, rb, 0, 0))

    # Explicit scoped-VMEM budget: double-buffered blocks + accumulator slack.
    xb_bytes = 4 * TRh * Wh * Cin * itemsize
    wt_bytes = (K * Cin * Cout * itemsize) if has_mix else 0
    out_bytes = TR * Wo * Cout * itemsize
    need = 2 * (xb_bytes + wt_bytes + out_bytes) + 4 * TR * Wo * Cout * 4 + (2 << 20)
    vmem_limit = min(48 << 20, max(32 << 20, int(1.5 * need)))

    kernel = _make_kernel(fw, TR, Wo, Cin, Cout, f2d, has_mix)
    out_pc = pl.pallas_call(
        kernel,
        out_shape=jax.ShapeDtypeStruct((N, R, TR * Wo, Cout), compute_dtype),
        grid_spec=pltpu.PrefetchScalarGridSpec(
            num_scalar_prefetch=0,
            grid=(N, R),
            in_specs=in_specs,
            out_specs=out_specs,
        ),
        compiler_params=pltpu.CompilerParams(
            dimension_semantics=("parallel", "parallel"),
            vmem_limit_bytes=vmem_limit),
    )(*args)

    # (N, R, TR*Wo, Cout) -> (N, Cout, Ho, Wo): external contract stays NCHW.
    out = out_pc.reshape(N, R, TR, Wo, Cout)
    out = jnp.transpose(out, (0, 4, 1, 2, 3)).reshape(N, Cout, Ho, Wo)
    return out


def reference(x, resampling_filter, w=None):
    """Pure-JAX reference: depthwise strided lowpass conv (+ optional 1x1 conv)."""
    N, Cin, H, W = x.shape
    f2d = jnp.asarray(_lowpass_2d(resampling_filter), jnp.float32)
    fw = f2d.shape[0]
    pad0 = (fw - 2 + 1) // 2
    pad1 = (fw - 2) // 2
    dw = jnp.tile(f2d[None, None], (Cin, 1, 1, 1))              # (Cin, 1, fw, fw)
    y = jax.lax.conv_general_dilated(
        x, dw, window_strides=(2, 2), padding=((pad0, pad1), (pad0, pad1)),
        feature_group_count=Cin, dimension_numbers=("NCHW", "OIHW", "NCHW"))
    if w is None:
        return y
    return jax.lax.conv_general_dilated(
        y, w[:, :, None, None], (1, 1), "VALID",
        dimension_numbers=("NCHW", "OIHW", "NCHW"))


if __name__ == "__main__":
    key = jax.random.PRNGKey(0)
    kx, kw = jax.random.split(key)

    N, Cin, Cout, H, W = 2, 4, 8, 16, 16
    resampling_filter = [1.0, 2.0, 1.0]          # R3GAN default lowpass taps

    x = jax.random.normal(kx, (N, Cin, H, W), jnp.float32)
    # MSRInitializer for the 1x1 Convolution: N(0, gain/sqrt(FanIn)), bias-free.
    fan_in = Cin * 1 * 1
    w = jax.random.normal(kw, (Cout, Cin), jnp.float32) * (1.0 / math.sqrt(fan_in))

    # 1) f32 path, spatially tiled (row_tile=4 -> 2 row blocks, exercises halo).
    out = jax.block_until_ready(downsample_layer(x, resampling_filter, w, row_tile=4))
    ref = reference(x, resampling_filter, w)
    assert out.shape == (N, Cout, H // 2, W // 2), out.shape
    assert jnp.allclose(out, ref, atol=1e-4, rtol=1e-4), \
        float(jnp.max(jnp.abs(out - ref)))

    # 2) Cin == Cout path (module has no LinearLayer -> depthwise only).
    out_id = jax.block_until_ready(downsample_layer(x, resampling_filter, None,
                                                    row_tile=8))
    ref_id = reference(x, resampling_filter, None)
    assert jnp.allclose(out_id, ref_id, atol=1e-4, rtol=1e-4), \
        float(jnp.max(jnp.abs(out_id - ref_id)))

    # 3) bf16 MXU-operand path (v6e/v7x feedback): bf16 inputs/weights, f32 acc.
    out_bf = jax.block_until_ready(
        downsample_layer(x, resampling_filter, w, compute_dtype=jnp.bfloat16))
    x_bf = x.astype(jnp.bfloat16).astype(jnp.float32)
    w_bf = w.astype(jnp.bfloat16).astype(jnp.float32)
    ref_bf = reference(x_bf, resampling_filter, w_bf)
    assert jnp.allclose(out_bf.astype(jnp.float32), ref_bf, atol=5e-3, rtol=5e-3), \
        float(jnp.max(jnp.abs(out_bf.astype(jnp.float32) - ref_bf)))

    print("KERNEL_OK")
</pallas_src>

<mosaic_0001>
module attributes {stable_mosaic.version = 11 : i64} {
  func.func @kernel(%arg0: i32, %arg1: i32, %arg2: memref<1x1x4x5x9x4xf32, #tpu.memory_space<vmem>>, %arg3: memref<9x4x8xf32, #tpu.memory_space<vmem>>, %arg4: memref<1x1x32x8xf32, #tpu.memory_space<vmem>>) attributes {dimension_semantics = [#tpu.dimension_semantics<parallel>, #tpu.dimension_semantics<parallel>], iteration_bounds = array<i64: 2, 2>, scalar_prefetch = 0 : i64, scratch_operands = 0 : i64, tpu.core_type = #tpu.core_type<tc>, window_params = [{transform_indices = @transform_0, window_bounds = array<i64: 1, 1, 4, 5, 9, 4>}, {pipeline_mode = #tpu.pipeline_mode<synchronous>, transform_indices = @transform_1, window_bounds = array<i64: 9, 4, 8>}, {transform_indices = @transform_2, window_bounds = array<i64: 1, 1, 32, 8>}]} {
    %cst = arith.constant 0.000000e+00 : f32
    %0 = vector.broadcast %cst : f32 to vector<32x8xf32>
    %c0 = arith.constant 0 : index
    %c0_0 = arith.constant 0 : index
    %c0_1 = arith.constant 0 : index
    %c0_2 = arith.constant 0 : index
    %c0_3 = arith.constant 0 : index
    %c0_4 = arith.constant 0 : index
    %1 = vector.load %arg2[%c0, %c0_0, %c0_1, %c0_2, %c0_3, %c0_4] : memref<1x1x4x5x9x4xf32, #tpu.memory_space<vmem>>, vector<1x1x1x4x8x4xf32>
    %2 = vector.shape_cast %1 : vector<1x1x1x4x8x4xf32> to vector<4x8x4xf32>
    %3 = vector.shape_cast %2 : vector<4x8x4xf32> to vector<32x4xf32>
    %c0_5 = arith.constant 0 : index
    %c0_6 = arith.constant 0 : index
    %c0_7 = arith.constant 0 : index
    %4 = vector.load %arg3[%c0_5, %c0_6, %c0_7] : memref<9x4x8xf32, #tpu.memory_space<vmem>>, vector<1x4x8xf32>
    %5 = vector.shape_cast %4 : vector<1x4x8xf32> to vector<4x8xf32>
    %cst_8 = arith.constant dense<0.000000e+00> : vector<32x8xf32>
    %6 = tpu.matmul %3, %5, %cst_8 {dimension_numbers = #tpu.dot_dimension_numbers<[1], [0], [0], [1], [0, 0, 1, 1], [], []>} : vector<32x4xf32>, vector<4x8xf32>, vector<32x8xf32> -> vector<32x8xf32>
    %7 = arith.addf %0, %6 : vector<32x8xf32>
    %c0_9 = arith.constant 0 : index
    %c0_10 = arith.constant 0 : index
    %c1 = arith.constant 1 : index
    %c0_11 = arith.constant 0 : index
    %c0_12 = arith.constant 0 : index
    %c0_13 = arith.constant 0 : index
    %8 = vector.load %arg2[%c0_9, %c0_10, %c1, %c0_11, %c0_12, %c0_13] : memref<1x1x4x5x9x4xf32, #tpu.memory_space<vmem>>, vector<1x1x1x4x8x4xf32>
    %9 = vector.shape_cast %8 : vector<1x1x1x4x8x4xf32> to vector<4x8x4xf32>
    %10 = vector.shape_cast %9 : vector<4x8x4xf32> to vector<32x4xf32>
    %c1_14 = arith.constant 1 : index
    %c0_15 = arith.constant 0 : index
    %c0_16 = arith.constant 0 : index
    %11 = vector.load %arg3[%c1_14, %c0_15, %c0_16] : memref<9x4x8xf32, #tpu.memory_space<vmem>>, vector<1x4x8xf32>
    %12 = vector.shape_cast %11 : vector<1x4x8xf32> to vector<4x8xf32>
    %cst_17 = arith.constant dense<0.000000e+00> : vector<32x8xf32>
    %13 = tpu.matmul %10, %12, %cst_17 {dimension_numbers = #tpu.dot_dimension_numbers<[1], [0], [0], [1], [0, 0, 1, 1], [], []>} : vector<32x4xf32>, vector<4x8xf32>, vector<32x8xf32> -> vector<32x8xf32>
    %14 = arith.addf %7, %13 : vector<32x8xf32>
    %c0_18 = arith.constant 0 : index
    %c0_19 = arith.constant 0 : index
    %c0_20 = arith.constant 0 : index
    %c0_21 = arith.constant 0 : index
    %c1_22 = arith.constant 1 : index
    %c0_23 = arith.constant 0 : index
    %15 = vector.load %arg2[%c0_18, %c0_19, %c0_20, %c0_21, %c1_22, %c0_23] : memref<1x1x4x5x9x4xf32, #tpu.memory_space<vmem>>, vector<1x1x1x4x8x4xf32>
    %16 = vector.shape_cast %15 : vector<1x1x1x4x8x4xf32> to vector<4x8x4xf32>
    %17 = vector.shape_cast %16 : vector<4x8x4xf32> to vector<32x4xf32>
    %c2 = arith.constant 2 : index
    %c0_24 = arith.constant 0 : index
    %c0_25 = arith.constant 0 : index
    %18 = vector.load %arg3[%c2, %c0_24, %c0_25] : memref<9x4x8xf32, #tpu.memory_space<vmem>>, vector<1x4x8xf32>
    %19 = vector.shape_cast %18 : vector<1x4x8xf32> to vector<4x8xf32>
    %cst_26 = arith.constant dense<0.000000e+00> : vector<32x8xf32>
    %20 = tpu.matmul %17, %19, %cst_26 {dimension_numbers = #tpu.dot_dimension_numbers<[1], [0], [0], [1], [0, 0, 1, 1], [], []>} : vector<32x4xf32>, vector<4x8xf32>, vector<32x8xf32> -> vector<32x8xf32>
    %21 = arith.addf %14, %20 : vector<32x8xf32>
    %c0_27 = arith.constant 0 : index
    %c0_28 = arith.constant 0 : index
    %c2_29 = arith.constant 2 : index
    %c0_30 = arith.constant 0 : index
    %c0_31 = arith.constant 0 : index
    %c0_32 = arith.constant 0 : index
    %22 = vector.load %arg2[%c0_27, %c0_28, %c2_29, %c0_30, %c0_31, %c0_32] : memref<1x1x4x5x9x4xf32, #tpu.memory_space<vmem>>, vector<1x1x1x4x8x4xf32>
    %23 = vector.shape_cast %22 : vector<1x1x1x4x8x4xf32> to vector<4x8x4xf32>
    %24 = vector.shape_cast %23 : vector<4x8x4xf32> to vector<32x4xf32>
    %c3 = arith.constant 3 : index
    %c0_33 = arith.constant 0 : index
    %c0_34 = arith.constant 0 : index
    %25 = vector.load %arg3[%c3, %c0_33, %c0_34] : memref<9x4x8xf32, #tpu.memory_space<vmem>>, vector<1x4x8xf32>
    %26 = vector.shape_cast %25 : vector<1x4x8xf32> to vector<4x8xf32>
    %cst_35 = arith.constant dense<0.000000e+00> : vector<32x8xf32>
    %27 = tpu.matmul %24, %26, %cst_35 {dimension_numbers = #tpu.dot_dimension_numbers<[1], [0], [0], [1], [0, 0, 1, 1], [], []>} : vector<32x4xf32>, vector<4x8xf32>, vector<32x8xf32> -> vector<32x8xf32>
    %28 = arith.addf %21, %27 : vector<32x8xf32>
    %c0_36 = arith.constant 0 : index
    %c0_37 = arith.constant 0 : index
    %c3_38 = arith.constant 3 : index
    %c0_39 = arith.constant 0 : index
    %c0_40 = arith.constant 0 : index
    %c0_41 = arith.constant 0 : index
    %29 = vector.load %arg2[%c0_36, %c0_37, %c3_38, %c0_39, %c0_40, %c0_41] : memref<1x1x4x5x9x4xf32, #tpu.memory_space<vmem>>, vector<1x1x1x4x8x4xf32>
    %30 = vector.shape_cast %29 : vector<1x1x1x4x8x4xf32> to vector<4x8x4xf32>
    %31 = vector.shape_cast %30 : vector<4x8x4xf32> to vector<32x4xf32>
    %c4 = arith.constant 4 : index
    %c0_42 = arith.constant 0 : index
    %c0_43 = arith.constant 0 : index
    %32 = vector.load %arg3[%c4, %c0_42, %c0_43] : memref<9x4x8xf32, #tpu.memory_space<vmem>>, vector<1x4x8xf32>
    %33 = vector.shape_cast %32 : vector<1x4x8xf32> to vector<4x8xf32>
    %cst_44 = arith.constant dense<0.000000e+00> : vector<32x8xf32>
    %34 = tpu.matmul %31, %33, %cst_44 {dimension_numbers = #tpu.dot_dimension_numbers<[1], [0], [0], [1], [0, 0, 1, 1], [], []>} : vector<32x4xf32>, vector<4x8xf32>, vector<32x8xf32> -> vector<32x8xf32>
    %35 = arith.addf %28, %34 : vector<32x8xf32>
    %c0_45 = arith.constant 0 : index
    %c0_46 = arith.constant 0 : index
    %c2_47 = arith.constant 2 : index
    %c0_48 = arith.constant 0 : index
    %c1_49 = arith.constant 1 : index
    %c0_50 = arith.constant 0 : index
    %36 = vector.load %arg2[%c0_45, %c0_46, %c2_47, %c0_48, %c1_49, %c0_50] : memref<1x1x4x5x9x4xf32, #tpu.memory_space<vmem>>, vector<1x1x1x4x8x4xf32>
    %37 = vector.shape_cast %36 : vector<1x1x1x4x8x4xf32> to vector<4x8x4xf32>
    %38 = vector.shape_cast %37 : vector<4x8x4xf32> to vector<32x4xf32>
    %c5 = arith.constant 5 : index
    %c0_51 = arith.constant 0 : index
    %c0_52 = arith.constant 0 : index
    %39 = vector.load %arg3[%c5, %c0_51, %c0_52] : memref<9x4x8xf32, #tpu.memory_space<vmem>>, vector<1x4x8xf32>
    %40 = vector.shape_cast %39 : vector<1x4x8xf32> to vector<4x8xf32>
    %cst_53 = arith.constant dense<0.000000e+00> : vector<32x8xf32>
    %41 = tpu.matmul %38, %40, %cst_53 {dimension_numbers = #tpu.dot_dimension_numbers<[1], [0], [0], [1], [0, 0, 1, 1], [], []>} : vector<32x4xf32>, vector<4x8xf32>, vector<32x8xf32> -> vector<32x8xf32>
    %42 = arith.addf %35, %41 : vector<32x8xf32>
    %c0_54 = arith.constant 0 : index
    %c0_55 = arith.constant 0 : index
    %c0_56 = arith.constant 0 : index
    %c1_57 = arith.constant 1 : index
    %c0_58 = arith.constant 0 : index
    %c0_59 = arith.constant 0 : index
    %43 = vector.load %arg2[%c0_54, %c0_55, %c0_56, %c1_57, %c0_58, %c0_59] : memref<1x1x4x5x9x4xf32, #tpu.memory_space<vmem>>, vector<1x1x1x4x8x4xf32>
    %44 = vector.shape_cast %43 : vector<1x1x1x4x8x4xf32> to vector<4x8x4xf32>
    %45 = vector.shape_cast %44 : vector<4x8x4xf32> to vector<32x4xf32>
    %c6 = arith.constant 6 : index
    %c0_60 = arith.constant 0 : index
    %c0_61 = arith.constant 0 : index
    %46 = vector.load %arg3[%c6, %c0_60, %c0_61] : memref<9x4x8xf32, #tpu.memory_space<vmem>>, vector<1x4x8xf32>
    %47 = vector.shape_cast %46 : vector<1x4x8xf32> to vector<4x8xf32>
    %cst_62 = arith.constant dense<0.000000e+00> : vector<32x8xf32>
    %48 = tpu.matmul %45, %47, %cst_62 {dimension_numbers = #tpu.dot_dimension_numbers<[1], [0], [0], [1], [0, 0, 1, 1], [], []>} : vector<32x4xf32>, vector<4x8xf32>, vector<32x8xf32> -> vector<32x8xf32>
    %49 = arith.addf %42, %48 : vector<32x8xf32>
    %c0_63 = arith.constant 0 : index
    %c0_64 = arith.constant 0 : index
    %c1_65 = arith.constant 1 : index
    %c1_66 = arith.constant 1 : index
    %c0_67 = arith.constant 0 : index
    %c0_68 = arith.constant 0 : index
    %50 = vector.load %arg2[%c0_63, %c0_64, %c1_65, %c1_66, %c0_67, %c0_68] : memref<1x1x4x5x9x4xf32, #tpu.memory_space<vmem>>, vector<1x1x1x4x8x4xf32>
    %51 = vector.shape_cast %50 : vector<1x1x1x4x8x4xf32> to vector<4x8x4xf32>
    %52 = vector.shape_cast %51 : vector<4x8x4xf32> to vector<32x4xf32>
    %c7 = arith.constant 7 : index
    %c0_69 = arith.constant 0 : index
    %c0_70 = arith.constant 0 : index
    %53 = vector.load %arg3[%c7, %c0_69, %c0_70] : memref<9x4x8xf32, #tpu.memory_space<vmem>>, vector<1x4x8xf32>
    %54 = vector.shape_cast %53 : vector<1x4x8xf32> to vector<4x8xf32>
    %cst_71 = arith.constant dense<0.000000e+00> : vector<32x8xf32>
    %55 = tpu.matmul %52, %54, %cst_71 {dimension_numbers = #tpu.dot_dimension_numbers<[1], [0], [0], [1], [0, 0, 1, 1], [], []>} : vector<32x4xf32>, vector<4x8xf32>, vector<32x8xf32> -> vector<32x8xf32>
    %56 = arith.addf %49, %55 : vector<32x8xf32>
    %c0_72 = arith.constant 0 : index
    %c0_73 = arith.constant 0 : index
    %c0_74 = arith.constant 0 : index
    %c1_75 = arith.constant 1 : index
    %c1_76 = arith.constant 1 : index
    %c0_77 = arith.constant 0 : index
    %57 = vector.load %arg2[%c0_72, %c0_73, %c0_74, %c1_75, %c1_76, %c0_77] : memref<1x1x4x5x9x4xf32, #tpu.memory_space<vmem>>, vector<1x1x1x4x8x4xf32>
    %58 = vector.shape_cast %57 : vector<1x1x1x4x8x4xf32> to vector<4x8x4xf32>
    %59 = vector.shape_cast %58 : vector<4x8x4xf32> to vector<32x4xf32>
    %c8 = arith.constant 8 : index
    %c0_78 = arith.constant 0 : index
    %c0_79 = arith.constant 0 : index
    %60 = vector.load %arg3[%c8, %c0_78, %c0_79] : memref<9x4x8xf32, #tpu.memory_space<vmem>>, vector<1x4x8xf32>
    %61 = vector.shape_cast %60 : vector<1x4x8xf32> to vector<4x8xf32>
    %cst_80 = arith.constant dense<0.000000e+00> : vector<32x8xf32>
    %62 = tpu.matmul %59, %61, %cst_80 {dimension_numbers = #tpu.dot_dimension_numbers<[1], [0], [0], [1], [0, 0, 1, 1], [], []>} : vector<32x4xf32>, vector<4x8xf32>, vector<32x8xf32> -> vector<32x8xf32>
    %63 = arith.addf %56, %62 : vector<32x8xf32>
    %c0_81 = arith.constant 0 : index
    %c0_82 = arith.constant 0 : index
    %c0_83 = arith.constant 0 : index
    %c0_84 = arith.constant 0 : index
    %64 = vector.load %arg4[%c0_81, %c0_82, %c0_83, %c0_84] : memref<1x1x32x8xf32, #tpu.memory_space<vmem>>, vector<1x1x32x8xf32>
    %65 = vector.shape_cast %64 : vector<1x1x32x8xf32> to vector<32x8xf32>
    %66 = vector.shape_cast %63 : vector<32x8xf32> to vector<1x1x32x8xf32>
    tpu.vector_store %arg4[%c0_81, %c0_82, %c0_83, %c0_84], %66 {strides = array<i32>} : memref<1x1x32x8xf32, #tpu.memory_space<vmem>>, vector<1x1x32x8xf32>,
    return
  }
  func.func @transform_0(%arg0: i32, %arg1: i32) -> (i32, i32, i32, i32, i32, i32) {
    %c0_i32 = arith.constant 0 : i32
    %c0_i32_0 = arith.constant 0 : i32
    %c0_i32_1 = arith.constant 0 : i32
    %c0_i32_2 = arith.constant 0 : i32
    %c0_i32_3 = arith.constant 0 : i32
    return %arg0, %arg1, %c0_i32, %c0_i32_0, %c0_i32_1, %c0_i32_2 : i32, i32, i32, i32, i32, i32
  }
  func.func @transform_1(%arg0: i32, %arg1: i32) -> (i32, i32, i32) {
    %c0_i32 = arith.constant 0 : i32
    %c0_i32_0 = arith.constant 0 : i32
    %c0_i32_1 = arith.constant 0 : i32
    %c0_i32_2 = arith.constant 0 : i32
    return %c0_i32, %c0_i32_0, %c0_i32_1 : i32, i32, i32
  }
  func.func @transform_2(%arg0: i32, %arg1: i32) -> (i32, i32, i32, i32) {
    %c0_i32 = arith.constant 0 : i32
    %c0_i32_0 = arith.constant 0 : i32
    %c0_i32_1 = arith.constant 0 : i32
    return %arg0, %arg1, %c0_i32, %c0_i32_0 : i32, i32, i32, i32
  }
}

</mosaic_0001>

<llo_original>
// kernel: tpu_custom_call.1
$region0: #{tpu_custom_call.1}
  #allocation0 [shape = 'u32[]', space=smem, size = 0x4, offset = 0x4, fixed_abs, tag = 'smem constant byte address 0x4 - core index']
  #allocation1 [shape = 'u32[144,128]{1,0:T(1,128)}', space=vmem, size = 0x12000, scoped, tag = 'internal scratch']
  %s0 = inlined_call_operand.vmem [shape: f32[2,2,4,5,9,4], index: 0, kind: input, shape index: {}]
  %s1 = inlined_call_operand.vmem [shape: f32[9,4,8], index: 1, kind: input, shape index: {}]
  %s2 = inlined_call_operand.vmem [shape: f32[2,2,32,8], index: 2, kind: output, shape index: {}]
  %s3 = sld [smem:[#allocation0]]
  $region41: #{tpu_custom_call.1} parent=0
    _
  %s5 = ssub.s32 1, %s3
  %s6 = scalar_select 0, %s5, %s3
  loop: start=0, step=1, limit=6
  $region2: #{tpu_custom_call.1} parent=0 // loop_pre_header
    _
  $region3: #{tpu_custom_call.1} parent=0 // loop_header
    %s8 = sphi 0, %s12
    %p9 = scmp.ge.s32.totalorder %s8, 6
    %s15 = sphi 0, %s27
    %s16 = sphi 0, %s23
    %s17 = sphi 0, %s15
    %s18 = sphi 0, %s16
    %s19 = sphi 0, %s17
    %s20 = sphi 0, %s18
    %s32 = sphi 0, %s34
    %s35 = sphi 0, %s32
    %s36 = sphi 0, %s35
    %s52 = sphi 0, %s36
    %s56 = sphi 0, %s56
    %s58 = sphi 0, %s56
    %s59 = sphi 0, %s58
    %s73 = sphi 0, %s59
    %s81 = sphi 0, %s83
    %s84 = sphi 0, %s81
    %s85 = sphi 0, %s84
    %s101 = sphi 0, %s85
  $region4: #{tpu_custom_call.1} parent=0 // loop_header_branch
    %11 = sbr.rel (%p9) target = $region8
  $region5: #{tpu_custom_call.1} parent=0 // loop_body
    %s13 = ssub.s32 %s8, 1
    %s14 = ssub.s32 %s8, 2
    %s21 = sadd.s32 1, %s16
    %p22 = scmp.ge.s32.totalorder %s21, 2
    %s23 = scalar_select %p22, 0, %s21
    %s24 = sadd.s32 1, %s15
    %s25 = scalar_select %p22, %s24, %s15
    %p26 = scmp.ge.s32.totalorder %s25, 2
    %s27 = scalar_select %p26, 0, %s25
    %s28 = ssub.s32 %s15, %s27
    %s29 = ssub.s32 %s16, %s23
    %s30 = sor.u32 %s28, %s29
    %p31 = scmp.eq.s32.totalorder %s30, 0
    %s33 = sadd.s32 %s32, 1
    %s34 = scalar_select %p31, %s32, %s33
    %p37 = pneg %p31
    %p38 = scmp.eq.s32.totalorder %s8, 3
    %p39 = por %p37, %p38
    %p40 = scmp.ne.s32.totalorder %s32, %s35
    %p41 = scmp.eq.s32.totalorder %s8, 0
    %p42 = por %p40, %p41
    %p43 = scmp.ne.s32.totalorder %s32, %s35
    %p44 = scmp.eq.s32.totalorder %s13, 3
    %p45 = por %p43, %p44
    %p46 = scmp.ne.s32.totalorder %s35, %s36
    %p47 = scmp.eq.s32.totalorder %s13, 0
    %p48 = por %p46, %p47
    %p49 = scmp.ne.s32.totalorder %s35, %s36
    %p50 = scmp.eq.s32.totalorder %s14, 3
    %p51 = por %p49, %p50
    %p53 = scmp.ne.s32.totalorder %s36, %s52
    %p54 = scmp.eq.s32.totalorder %s14, 0
    %p55 = por %p53, %p54
    %s57 = sadd.s32 %s56, 1
    %p60 = scmp.eq.s32.totalorder %s8, 3
    %p61 = scmp.ne.s32.totalorder %s56, %s58
    %p62 = scmp.eq.s32.totalorder %s8, 0
    %p63 = por %p61, %p62
    %p64 = scmp.ne.s32.totalorder %s56, %s58
    %p65 = scmp.eq.s32.totalorder %s13, 3
    %p66 = por %p64, %p65
    %p67 = scmp.ne.s32.totalorder %s58, %s59
    %p68 = scmp.eq.s32.totalorder %s13, 0
    %p69 = por %p67, %p68
    %p70 = scmp.ne.s32.totalorder %s58, %s59
    %p71 = scmp.eq.s32.totalorder %s14, 3
    %p72 = por %p70, %p71
    %p74 = scmp.ne.s32.totalorder %s59, %s73
    %p75 = scmp.eq.s32.totalorder %s14, 0
    %p76 = por %p74, %p75
    %s77 = ssub.s32 %s15, %s27
    %s78 = ssub.s32 %s16, %s23
    %s79 = sor.u32 %s77, %s78
    %p80 = scmp.eq.s32.totalorder %s79, 0
    %s82 = sadd.s32 %s81, 1
    %s83 = scalar_select %p80, %s81, %s82
    %p86 = pneg %p80
    %p87 = scmp.eq.s32.totalorder %s8, 3
    %p88 = por %p86, %p87
    %p89 = scmp.ne.s32.totalorder %s81, %s84
    %p90 = scmp.eq.s32.totalorder %s8, 0
    %p91 = por %p89, %p90
    %p92 = scmp.ne.s32.totalorder %s81, %s84
    %p93 = scmp.eq.s32.totalorder %s13, 3
    %p94 = por %p92, %p93
    %p95 = scmp.ne.s32.totalorder %s84, %s85
    %p96 = scmp.eq.s32.totalorder %s13, 0
    %p97 = por %p95, %p96
    %p98 = scmp.ne.s32.totalorder %s84, %s85
    %p99 = scmp.eq.s32.totalorder %s14, 3
    %p100 = por %p98, %p99
    %p102 = scmp.ne.s32.totalorder %s85, %s101
    %p103 = scmp.eq.s32.totalorder %s14, 0
    %p104 = por %p102, %p103
    %p105 = scmp.le.s32.totalorder 1, %s8
    %p106 = scmp.lt.s32.totalorder %s8, 5
    %p107 = pnand %p105, %p106
    %p108 = pneg %p107
    // Predicated region
    $region9: #{tpu_custom_call.1} parent=5 // pred_check
      _
    $region10: #{tpu_custom_call.1} parent=5 // pred_check_branch
      %110 = sbr.rel (%p107) target = $region12
    $region11: #{tpu_custom_call.1} parent=5 // pred_region
      %s111 = ssub.s32 %s8, 1
      // Predicated region
      $region13: #{tpu_custom_call.1} parent=11 // pred_check
        %p112 = pneg %p69
      $region14: #{tpu_custom_call.1} parent=11 // pred_check_branch
        %114 = sbr.rel (%p112) target = $region16
      $region15: #{tpu_custom_call.1} parent=11 // pred_region
        _
      $region16: #{tpu_custom_call.1} parent=11 // pred_fallthru
        _
    $region12: #{tpu_custom_call.1} parent=5 // pred_fallthru
      _
    %p115 = scmp.lt.s32.totalorder %s8, 4
    // Predicated region
    $region17: #{tpu_custom_call.1} parent=5 // pred_check
      %p116 = pneg %p115
    $region18: #{tpu_custom_call.1} parent=5 // pred_check_branch
      %118 = sbr.rel (%p116) target = $region20
    $region19: #{tpu_custom_call.1} parent=5 // pred_region
      // Predicated region
      $region21: #{tpu_custom_call.1} parent=19 // pred_check
        %p119 = pneg %p42
      $region22: #{tpu_custom_call.1} parent=19 // pred_check_branch
        %121 = sbr.rel (%p119) target = $region24
      $region23: #{tpu_custom_call.1} parent=19 // pred_region
        %p122 = scmp.lt.s32.totalorder %s15, 1
        %s123 = scalar_select %p122, %s15, 1
        %p124 = scmp.lt.s32.totalorder %s16, 1
        %s125 = scalar_select %p124, %s16, 1
        %s126 = smul.addr %s125, 40
        %s127 = smul.addr %s123, 80
        %s128 = sadd.s32 %s126, %s127
        %s129 = smul.addr %s128, 8
        %s130 = scalar_lea.vmem %s0, %s129
      $region24: #{tpu_custom_call.1} parent=19 // pred_fallthru
        _
    $region20: #{tpu_custom_call.1} parent=5 // pred_fallthru
      _
    %p131 = scmp.le.s32.totalorder 1, %s8
    %p132 = scmp.lt.s32.totalorder %s8, 5
    %p133 = pnand %p131, %p132
    %p134 = pneg %p133
    // Predicated region
    $region25: #{tpu_custom_call.1} parent=5 // pred_check
      _
    $region26: #{tpu_custom_call.1} parent=5 // pred_check_branch
      %136 = sbr.rel (%p133) target = $region28
    $region27: #{tpu_custom_call.1} parent=5 // pred_region
      %s137 = ssub.s32 %s8, 1
      %p138 = scmp.lt.s32.totalorder %s17, 1
      %s139 = scalar_select %p138, %s17, 1
      %p140 = scmp.lt.s32.totalorder %s18, 1
      %s141 = scalar_select %p140, %s18, 1
      %s142 = smul.addr %s141, 40
      %s143 = smul.addr %s139, 80
      %s144 = sadd.s32 %s142, %s143
      %s145 = smul.addr %s144, 8
      %s146 = scalar_lea.vmem %s0, %s145
      %p147 = pneg %p48
      %p148 = pneg %p45
      %p149 = pneg %p69
      %p150 = pneg %p66
      %p151 = pneg %p97
      %p152 = pneg %p94
      %p153 = scmp.lt.s32.totalorder %s17, 1
      %s154 = scalar_select %p153, %s17, 1
      %p155 = scmp.lt.s32.totalorder %s18, 1
      %s156 = scalar_select %p155, %s18, 1
      %s157 = smul.addr %s156, 4
      %s158 = smul.addr %s154, 8
      %s159 = sadd.s32 %s157, %s158
      %s160 = smul.addr %s159, 8
      %s161 = scalar_lea.vmem %s2, %s160
      %p162 = scmp.lt.s32.totalorder %s17, 1
      %s163 = scalar_select %p162, %s17, 1
      %p164 = scmp.lt.s32.totalorder %s18, 1
      %s165 = scalar_select %p164, %s18, 1
      %s166 = smul.addr %s165, 40
      %s167 = smul.addr %s163, 80
      %s168 = sadd.s32 %s166, %s167
      %s169 = smul.addr %s168, 8
      %s170 = scalar_lea.vmem %s0, %s169
      %p171 = scmp.lt.s32.totalorder %s17, 1
      %s172 = scalar_select %p171, %s17, 1
      %p173 = scmp.lt.s32.totalorder %s18, 1
      %s174 = scalar_select %p173, %s18, 1
      %s175 = smul.addr %s174, 4
      %s176 = smul.addr %s172, 8
      %s177 = sadd.s32 %s175, %s176
      %s178 = smul.addr %s177, 8
      %s179 = scalar_lea.vmem %s2, %s178
      %v180 = vld [vmem:[%s170] sm:$0xff]
      %v181 = vld [vmem:[%s170 + $0x10] sm:$0xff]
      %v182 = vld [vmem:[%s170 + $0x20] sm:$0xff]
      %v183 = vld [vmem:[%s170 + $0x30] sm:$0xff]
      %v184 = vld [vmem:[%s1] sm:$0xf]
      %s185 = scalar_lea.vmem %s170, 80
      %v186 = vld [vmem:[%s185] sm:$0xff]
      %v187 = vld [vmem:[%s185 + $0x10] sm:$0xff]
      %v188 = vld [vmem:[%s185 + $0x20] sm:$0xff]
      %v189 = vld [vmem:[%s185 + $0x30] sm:$0xff]
      %s190 = scalar_lea.vmem %s1, 4
      %v191 = vld [vmem:[%s190] sm:$0xf]
      %vm192 = vcmask 31744
      %v194 = vsel %vm192, %v186, 0
      %v197 = vsel %vm192, %v187, 0
      %v200 = vsel %vm192, %v188, 0
      %v203 = vsel %vm192, %v189, 0
      %vm205 = vcmask 1043456
      %v207 = vsel %vm205, %v191, 0
      %209 = vmatprep.subr.mxu0 0.0
      %210 = vmatpush1.msra.mxu0 %v207
      %211 = vmatprep.subr.mxu0 0.0
      %212 = vmatpush1.msra.mxu0 0.0
      %213 = vmatprep.subr.mxu0 0.0
      %214 = vmatpush1.msra.mxu0 0.0
      %215 = vmatprep.subr.mxu0 0.0
      %216 = vmatpush1.msra.mxu0 0.0
      %217 = vmatprep.subr.mxu0 0.0
      %218 = vmatpush1.msra.mxu0 0.0
      %219 = vmatprep.subr.mxu0 0.0
      %220 = vmatpush1.msra.mxu0 0.0
      %221 = vmatprep.subr.mxu0 0.0
      %222 = vmatpush1.msra.mxu0 0.0
      %223 = vmatprep.subr.mxu0 0.0
      %224 = vmatpush1.msra.mxu0 0.0
      %225 = vmatprep.subr.mxu0 0.0
      %226 = vmatpush1.msra.mxu0 0.0
      %227 = vmatprep.subr.mxu0 0.0
      %228 = vmatpush1.msra.mxu0 0.0
      %229 = vmatprep.subr.mxu0 0.0
      %230 = vmatpush1.msra.mxu0 0.0
      %231 = vmatprep.subr.mxu0 0.0
      %232 = vmatpush1.msra.mxu0 0.0
      %233 = vmatprep.subr.mxu0 0.0
      %234 = vmatpush1.msra.mxu0 0.0
      %235 = vmatprep.subr.mxu0 0.0
      %236 = vmatpush1.msra.mxu0 0.0
      %237 = vmatprep.subr.mxu0 0.0
      %238 = vmatpush1.msra.mxu0 0.0
      %239 = vmatprep.subr.mxu0 0.0
      %240 = vmatpush1.msra.mxu0 0.0
      %241 = vmatprep.subr.mxu0 0.0
      %242 = vmatpush1.msra.mxu0 0.0
      %243 = vmatprep.subr.mxu0 0.0
      %244 = vmatpush1.msra.mxu0 0.0
      %245 = vmatprep.subr.mxu0 0.0
      %246 = vmatpush1.msra.mxu0 0.0
      %247 = vmatprep.subr.mxu0 0.0
      %248 = vmatpush1.msra.mxu0 0.0
      %249 = vmatprep.subr.mxu0 0.0
      %250 = vmatpush1.msra.mxu0 0.0
      %251 = vmatprep.subr.mxu0 0.0
      %252 = vmatpush1.msra.mxu0 0.0
      %253 = vmatprep.subr.mxu0 0.0
      %254 = vmatpush1.msra.mxu0 0.0
      %255 = vmatprep.subr.mxu0 0.0
      %256 = vmatpush1.msra.mxu0 0.0
      %257 = vmatprep.subr.mxu0 0.0
      %258 = vmatpush1.msra.mxu0 0.0
      %259 = vmatprep.subr.mxu0 0.0
      %260 = vmatpush1.msra.mxu0 0.0
      %261 = vmatprep.subr.mxu0 0.0
      %262 = vmatpush1.msra.mxu0 0.0
      %263 = vmatprep.subr.mxu0 0.0
      %264 = vmatpush1.msra.mxu0 0.0
      %265 = vmatprep.subr.mxu0 0.0
      %266 = vmatpush1.msra.mxu0 0.0
      %267 = vmatprep.subr.mxu0 0.0
      %268 = vmatpush1.msra.mxu0 0.0
      %269 = vmatprep.subr.mxu0 0.0
      %270 = vmatpush1.msra.mxu0 0.0
      %271 = vmatprep.subr.mxu0 0.0
      %272 = vmatpush1.msra.mxu0 0.0
      %273 = vmatprep.mubr.f32.mxu0 0.0
      %274 = vmatmul.mubr.f32.gmra.mrb[0].mxu0 %v194
      %v275 = vpop.f32.mrb[0].mxu0
      %v276 = vadd.f32 0.0, %v275
      %v277 = vpop.f32.mrb[0].mxu0
      %278 = vmatprep.mubr.f32.mxu0 0.0
      %279 = vmatmul.mubr.f32.gmra.mrb[0].mxu0 %v197
      %v280 = vpop.f32.mrb[0].mxu0
      %v281 = vadd.f32 0.0, %v280
      %v282 = vpop.f32.mrb[0].mxu0
      %283 = vmatprep.mubr.f32.mxu0 0.0
      %284 = vmatmul.mubr.f32.gmra.mrb[0].mxu0 %v200
      %v285 = vpop.f32.mrb[0].mxu0
      %v286 = vadd.f32 0.0, %v285
      %v287 = vpop.f32.mrb[0].mxu0
      %288 = vmatprep.mubr.f32.mxu0 0.0
      %289 = vmatmul.mubr.f32.gmra.mrb[0].mxu0 %v203
      %v290 = vpop.f32.mrb[0].mxu0
      %v291 = vadd.f32 0.0, %v290
      %v292 = vpop.f32.mrb[0].mxu0
      %293 = vdwg.mxu0
      %v295 = vsel %vm192, %v180, 0
      %v298 = vsel %vm192, %v181, 0
      %v301 = vsel %vm192, %v182, 0
      %v304 = vsel %vm192, %v183, 0
      %v307 = vsel %vm205, %v184, 0
      %309 = vmatprep.subr.mxu0 0.0
      %310 = vmatpush1.msra.mxu0 %v307
      %311 = vmatprep.subr.mxu0 0.0
      %312 = vmatpush1.msra.mxu0 0.0
      %313 = vmatprep.subr.mxu0 0.0
      %314 = vmatpush1.msra.mxu0 0.0
      %315 = vmatprep.subr.mxu0 0.0
      %316 = vmatpush1.msra.mxu0 0.0
      %317 = vmatprep.subr.mxu0 0.0
      %318 = vmatpush1.msra.mxu0 0.0
      %319 = vmatprep.subr.mxu0 0.0
      %320 = vmatpush1.msra.mxu0 0.0
      %321 = vmatprep.subr.mxu0 0.0
      %322 = vmatpush1.msra.mxu0 0.0
      %323 = vmatprep.subr.mxu0 0.0
      %324 = vmatpush1.msra.mxu0 0.0
      %325 = vmatprep.subr.mxu0 0.0
      %326 = vmatpush1.msra.mxu0 0.0
      %327 = vmatprep.subr.mxu0 0.0
      %328 = vmatpush1.msra.mxu0 0.0
      %329 = vmatprep.subr.mxu0 0.0
      %330 = vmatpush1.msra.mxu0 0.0
      %331 = vmatprep.subr.mxu0 0.0
      %332 = vmatpush1.msra.mxu0 0.0
      %333 = vmatprep.subr.mxu0 0.0
      %334 = vmatpush1.msra.mxu0 0.0
      %335 = vmatprep.subr.mxu0 0.0
      %336 = vmatpush1.msra.mxu0 0.0
      %337 = vmatprep.subr.mxu0 0.0
      %338 = vmatpush1.msra.mxu0 0.0
      %339 = vmatprep.subr.mxu0 0.0
      %340 = vmatpush1.msra.mxu0 0.0
      %341 = vmatprep.subr.mxu0 0.0
      %342 = vmatpush1.msra.mxu0 0.0
      %343 = vmatprep.subr.mxu0 0.0
      %344 = vmatpush1.msra.mxu0 0.0
      %345 = vmatprep.subr.mxu0 0.0
      %346 = vmatpush1.msra.mxu0 0.0
      %347 = vmatprep.subr.mxu0 0.0
      %348 = vmatpush1.msra.mxu0 0.0
      %349 = vmatprep.subr.mxu0 0.0
      %350 = vmatpush1.msra.mxu0 0.0
      %351 = vmatprep.subr.mxu0 0.0
      %352 = vmatpush1.msra.mxu0 0.0
      %353 = vmatprep.subr.mxu0 0.0
      %354 = vmatpush1.msra.mxu0 0.0
      %355 = vmatprep.subr.mxu0 0.0
      %356 = vmatpush1.msra.mxu0 0.0
      %357 = vmatprep.subr.mxu0 0.0
      %358 = vmatpush1.msra.mxu0 0.0
      %359 = vmatprep.subr.mxu0 0.0
      %360 = vmatpush1.msra.mxu0 0.0
      %361 = vmatprep.subr.mxu0 0.0
      %362 = vmatpush1.msra.mxu0 0.0
      %363 = vmatprep.subr.mxu0 0.0
      %364 = vmatpush1.msra.mxu0 0.0
      %365 = vmatprep.subr.mxu0 0.0
      %366 = vmatpush1.msra.mxu0 0.0
      %367 = vmatprep.subr.mxu0 0.0
      %368 = vmatpush1.msra.mxu0 0.0
      %369 = vmatprep.subr.mxu0 0.0
      %370 = vmatpush1.msra.mxu0 0.0
      %371 = vmatprep.subr.mxu0 0.0
      %372 = vmatpush1.msra.mxu0 0.0
      %373 = vmatprep.mubr.f32.mxu0 0.0
      %374 = vmatmul.mubr.f32.gmra.mrb[0].mxu0 %v295
      %v375 = vpop.f32.mrb[0].mxu0
      %v376 = vadd.f32 %v276, %v375
      %v377 = vpop.f32.mrb[0].mxu0
      %378 = vmatprep.mubr.f32.mxu0 0.0
      %379 = vmatmul.mubr.f32.gmra.mrb[0].mxu0 %v298
      %v380 = vpop.f32.mrb[0].mxu0
      %v381 = vadd.f32 %v281, %v380
      %v382 = vpop.f32.mrb[0].mxu0
      %383 = vmatprep.mubr.f32.mxu0 0.0
      %384 = vmatmul.mubr.f32.gmra.mrb[0].mxu0 %v301
      %v385 = vpop.f32.mrb[0].mxu0
      %v386 = vadd.f32 %v286, %v385
      %v387 = vpop.f32.mrb[0].mxu0
      %388 = vmatprep.mubr.f32.mxu0 0.0
      %389 = vmatmul.mubr.f32.gmra.mrb[0].mxu0 %v304
      %v390 = vpop.f32.mrb[0].mxu0
      %v391 = vadd.f32 %v291, %v390
      %v392 = vpop.f32.mrb[0].mxu0
      %393 = vdwg.mxu0
      %v394 = vld [vmem:[%s170 + $0x1] sm:$0xff]
      %v395 = vld [vmem:[%s170 + $0x11] sm:$0xff]
      %v396 = vld [vmem:[%s170 + $0x21] sm:$0xff]
      %v397 = vld [vmem:[%s170 + $0x31] sm:$0xff]
      %s398 = scalar_lea.vmem %s1, 8
      %v399 = vld [vmem:[%s398] sm:$0xf]
      %v401 = vsel %vm192, %v394, 0
      %v404 = vsel %vm192, %v395, 0
      %v407 = vsel %vm192, %v396, 0
      %v410 = vsel %vm192, %v397, 0
      %v413 = vsel %vm205, %v399, 0
      %415 = vmatprep.subr.mxu0 0.0
      %416 = vmatpush1.msra.mxu0 %v413
      %417 = vmatprep.subr.mxu0 0.0
      %418 = vmatpush1.msra.mxu0 0.0
      %419 = vmatprep.subr.mxu0 0.0
      %420 = vmatpush1.msra.mxu0 0.0
      %421 = vmatprep.subr.mxu0 0.0
      %422 = vmatpush1.msra.mxu0 0.0
      %423 = vmatprep.subr.mxu0 0.0
      %424 = vmatpush1.msra.mxu0 0.0
      %425 = vmatprep.subr.mxu0 0.0
      %426 = vmatpush1.msra.mxu0 0.0
      %427 = vmatprep.subr.mxu0 0.0
      %428 = vmatpush1.msra.mxu0 0.0
      %429 = vmatprep.subr.mxu0 0.0
      %430 = vmatpush1.msra.mxu0 0.0
      %431 = vmatprep.subr.mxu0 0.0
      %432 = vmatpush1.msra.mxu0 0.0
      %433 = vmatprep.subr.mxu0 0.0
      %434 = vmatpush1.msra.mxu0 0.0
      %435 = vmatprep.subr.mxu0 0.0
      %436 = vmatpush1.msra.mxu0 0.0
      %437 = vmatprep.subr.mxu0 0.0
      %438 = vmatpush1.msra.mxu0 0.0
      %439 = vmatprep.subr.mxu0 0.0
      %440 = vmatpush1.msra.mxu0 0.0
      %441 = vmatprep.subr.mxu0 0.0
      %442 = vmatpush1.msra.mxu0 0.0
      %443 = vmatprep.subr.mxu0 0.0
      %444 = vmatpush1.msra.mxu0 0.0
      %445 = vmatprep.subr.mxu0 0.0
      %446 = vmatpush1.msra.mxu0 0.0
      %447 = vmatprep.subr.mxu0 0.0
      %448 = vmatpush1.msra.mxu0 0.0
      %449 = vmatprep.subr.mxu0 0.0
      %450 = vmatpush1.msra.mxu0 0.0
      %451 = vmatprep.subr.mxu0 0.0
      %452 = vmatpush1.msra.mxu0 0.0
      %453 = vmatprep.subr.mxu0 0.0
      %454 = vmatpush1.msra.mxu0 0.0
      %455 = vmatprep.subr.mxu0 0.0
      %456 = vmatpush1.msra.mxu0 0.0
      %457 = vmatprep.subr.mxu0 0.0
      %458 = vmatpush1.msra.mxu0 0.0
      %459 = vmatprep.subr.mxu0 0.0
      %460 = vmatpush1.msra.mxu0 0.0
      %461 = vmatprep.subr.mxu0 0.0
      %462 = vmatpush1.msra.mxu0 0.0
      %463 = vmatprep.subr.mxu0 0.0
      %464 = vmatpush1.msra.mxu0 0.0
      %465 = vmatprep.subr.mxu0 0.0
      %466 = vmatpush1.msra.mxu0 0.0
      %467 = vmatprep.subr.mxu0 0.0
      %468 = vmatpush1.msra.mxu0 0.0
      %469 = vmatprep.subr.mxu0 0.0
      %470 = vmatpush1.msra.mxu0 0.0
      %471 = vmatprep.subr.mxu0 0.0
      %472 = vmatpush1.msra.mxu0 0.0
      %473 = vmatprep.subr.mxu0 0.0
      %474 = vmatpush1.msra.mxu0 0.0
      %475 = vmatprep.subr.mxu0 0.0
      %476 = vmatpush1.msra.mxu0 0.0
      %477 = vmatprep.subr.mxu0 0.0
      %478 = vmatpush1.msra.mxu0 0.0
      %479 = vmatprep.mubr.f32.mxu0 0.0
      %480 = vmatmul.mubr.f32.gmra.mrb[0].mxu0 %v401
      %v481 = vpop.f32.mrb[0].mxu0
      %v482 = vadd.f32 0.0, %v481
      %v483 = vpop.f32.mrb[0].mxu0
      %484 = vmatprep.mubr.f32.mxu0 0.0
      %485 = vmatmul.mubr.f32.gmra.mrb[0].mxu0 %v404
      %v486 = vpop.f32.mrb[0].mxu0
      %v487 = vadd.f32 0.0, %v486
      %v488 = vpop.f32.mrb[0].mxu0
      %489 = vmatprep.mubr.f32.mxu0 0.0
      %490 = vmatmul.mubr.f32.gmra.mrb[0].mxu0 %v407
      %v491 = vpop.f32.mrb[0].mxu0
      %v492 = vadd.f32 0.0, %v491
      %v493 = vpop.f32.mrb[0].mxu0
      %494 = vmatprep.mubr.f32.mxu0 0.0
      %495 = vmatmul.mubr.f32.gmra.mrb[0].mxu0 %v410
      %v496 = vpop.f32.mrb[0].mxu0
      %v497 = vadd.f32 0.0, %v496
      %v498 = vpop.f32.mrb[0].mxu0
      %499 = vdwg.mxu0
      %v500 = vadd.f32 %v376, %v482
      %v501 = vadd.f32 %v381, %v487
      %v502 = vadd.f32 %v386, %v492
      %v503 = vadd.f32 %v391, %v497
      %s504 = scalar_lea.vmem %s170, 160
      %v505 = vld [vmem:[%s504] sm:$0xff]
      %v506 = vld [vmem:[%s504 + $0x10] sm:$0xff]
      %v507 = vld [vmem:[%s504 + $0x20] sm:$0xff]
      %v508 = vld [vmem:[%s504 + $0x30] sm:$0xff]
      %s509 = scalar_lea.vmem %s1, 12
      %v510 = vld [vmem:[%s509] sm:$0xf]
      %v512 = vsel %vm192, %v505, 0
      %v515 = vsel %vm192, %v506, 0
      %v518 = vsel %vm192, %v507, 0
      %v521 = vsel %vm192, %v508, 0
      %v524 = vsel %vm205, %v510, 0
      %526 = vmatprep.subr.mxu0 0.0
      %527 = vmatpush1.msra.mxu0 %v524
      %528 = vmatprep.subr.mxu0 0.0
      %529 = vmatpush1.msra.mxu0 0.0
      %530 = vmatprep.subr.mxu0 0.0
      %531 = vmatpush1.msra.mxu0 0.0
      %532 = vmatprep.subr.mxu0 0.0
      %533 = vmatpush1.msra.mxu0 0.0
      %534 = vmatprep.subr.mxu0 0.0
      %535 = vmatpush1.msra.mxu0 0.0
      %536 = vmatprep.subr.mxu0 0.0
      %537 = vmatpush1.msra.mxu0 0.0
      %538 = vmatprep.subr.mxu0 0.0
      %539 = vmatpush1.msra.mxu0 0.0
      %540 = vmatprep.subr.mxu0 0.0
      %541 = vmatpush1.msra.mxu0 0.0
      %542 = vmatprep.subr.mxu0 0.0
      %543 = vmatpush1.msra.mxu0 0.0
      %544 = vmatprep.subr.mxu0 0.0
      %545 = vmatpush1.msra.mxu0 0.0
      %546 = vmatprep.subr.mxu0 0.0
      %547 = vmatpush1.msra.mxu0 0.0
      %548 = vmatprep.subr.mxu0 0.0
      %549 = vmatpush1.msra.mxu0 0.0
      %550 = vmatprep.subr.mxu0 0.0
      %551 = vmatpush1.msra.mxu0 0.0
      %552 = vmatprep.subr.mxu0 0.0
      %553 = vmatpush1.msra.mxu0 0.0
      %554 = vmatprep.subr.mxu0 0.0
      %555 = vmatpush1.msra.mxu0 0.0
      %556 = vmatprep.subr.mxu0 0.0
      %557 = vmatpush1.msra.mxu0 0.0
      %558 = vmatprep.subr.mxu0 0.0
      %559 = vmatpush1.msra.mxu0 0.0
      %560 = vmatprep.subr.mxu0 0.0
      %561 = vmatpush1.msra.mxu0 0.0
      %562 = vmatprep.subr.mxu0 0.0
      %563 = vmatpush1.msra.mxu0 0.0
      %564 = vmatprep.subr.mxu0 0.0
      %565 = vmatpush1.msra.mxu0 0.0
      %566 = vmatprep.subr.mxu0 0.0
      %567 = vmatpush1.msra.mxu0 0.0
      %568 = vmatprep.subr.mxu0 0.0
      %569 = vmatpush1.msra.mxu0 0.0
      %570 = vmatprep.subr.mxu0 0.0
      %571 = vmatpush1.msra.mxu0 0.0
      %572 = vmatprep.subr.mxu0 0.0
      %573 = vmatpush1.msra.mxu0 0.0
      %574 = vmatprep.subr.mxu0 0.0
      %575 = vmatpush1.msra.mxu0 0.0
      %576 = vmatprep.subr.mxu0 0.0
      %577 = vmatpush1.msra.mxu0 0.0
      %578 = vmatprep.subr.mxu0 0.0
      %579 = vmatpush1.msra.mxu0 0.0
      %580 = vmatprep.subr.mxu0 0.0
      %581 = vmatpush1.msra.mxu0 0.0
      %582 = vmatprep.subr.mxu0 0.0
      %583 = vmatpush1.msra.mxu0 0.0
      %584 = vmatprep.subr.mxu0 0.0
      %585 = vmatpush1.msra.mxu0 0.0
      %586 = vmatprep.subr.mxu0 0.0
      %587 = vmatpush1.msra.mxu0 0.0
      %588 = vmatprep.subr.mxu0 0.0
      %589 = vmatpush1.msra.mxu0 0.0
      %590 = vmatprep.mubr.f32.mxu0 0.0
      %591 = vmatmul.mubr.f32.gmra.mrb[0].mxu0 %v512
      %v592 = vpop.f32.mrb[0].mxu0
      %v593 = vadd.f32 0.0, %v592
      %v594 = vpop.f32.mrb[0].mxu0
      %595 = vmatprep.mubr.f32.mxu0 0.0
      %596 = vmatmul.mubr.f32.gmra.mrb[0].mxu0 %v515
      %v597 = vpop.f32.mrb[0].mxu0
      %v598 = vadd.f32 0.0, %v597
      %v599 = vpop.f32.mrb[0].mxu0
      %600 = vmatprep.mubr.f32.mxu0 0.0
      %601 = vmatmul.mubr.f32.gmra.mrb[0].mxu0 %v518
      %v602 = vpop.f32.mrb[0].mxu0
      %v603 = vadd.f32 0.0, %v602
      %v604 = vpop.f32.mrb[0].mxu0
      %605 = vmatprep.mubr.f32.mxu0 0.0
      %606 = vmatmul.mubr.f32.gmra.mrb[0].mxu0 %v521
      %v607 = vpop.f32.mrb[0].mxu0
      %v608 = vadd.f32 0.0, %v607
      %v609 = vpop.f32.mrb[0].mxu0
      %610 = vdwg.mxu0
      %v611 = vadd.f32 %v500, %v593
      %v612 = vadd.f32 %v501, %v598
      %v613 = vadd.f32 %v502, %v603
      %v614 = vadd.f32 %v503, %v608
      %s615 = scalar_lea.vmem %s170, 240
      %v616 = vld [vmem:[%s615] sm:$0xff]
      %v617 = vld [vmem:[%s615 + $0x10] sm:$0xff]
      %v618 = vld [vmem:[%s615 + $0x20] sm:$0xff]
      %v619 = vld [vmem:[%s615 + $0x30] sm:$0xff]
      %s620 = scalar_lea.vmem %s1, 16
      %v621 = vld [vmem:[%s620] sm:$0xf]
      %v623 = vsel %vm192, %v616, 0
      %v626 = vsel %vm192, %v617, 0
      %v629 = vsel %vm192, %v618, 0
      %v632 = vsel %vm192, %v619, 0
      %v635 = vsel %vm205, %v621, 0
      %637 = vmatprep.subr.mxu0 0.0
      %638 = vmatpush1.msra.mxu0 %v635
      %639 = vmatprep.subr.mxu0 0.0
      %640 = vmatpush1.msra.mxu0 0.0
      %641 = vmatprep.subr.mxu0 0.0
      %642 = vmatpush1.msra.mxu0 0.0
      %643 = vmatprep.subr.mxu0 0.0
      %644 = vmatpush1.msra.mxu0 0.0
      %645 = vmatprep.subr.mxu0 0.0
      %646 = vmatpush1.msra.mxu0 0.0
      %647 = vmatprep.subr.mxu0 0.0
      %648 = vmatpush1.msra.mxu0 0.0
      %649 = vmatprep.subr.mxu0 0.0
      %650 = vmatpush1.msra.mxu0 0.0
      %651 = vmatprep.subr.mxu0 0.0
      %652 = vmatpush1.msra.mxu0 0.0
      %653 = vmatprep.subr.mxu0 0.0
      %654 = vmatpush1.msra.mxu0 0.0
      %655 = vmatprep.subr.mxu0 0.0
      %656 = vmatpush1.msra.mxu0 0.0
      %657 = vmatprep.subr.mxu0 0.0
      %658 = vmatpush1.msra.mxu0 0.0
      %659 = vmatprep.subr.mxu0 0.0
      %660 = vmatpush1.msra.mxu0 0.0
      %661 = vmatprep.subr.mxu0 0.0
      %662 = vmatpush1.msra.mxu0 0.0
      %663 = vmatprep.subr.mxu0 0.0
      %664 = vmatpush1.msra.mxu0 0.0
      %665 = vmatprep.subr.mxu0 0.0
      %666 = vmatpush1.msra.mxu0 0.0
      %667 = vmatprep.subr.mxu0 0.0
      %668 = vmatpush1.msra.mxu0 0.0
      %669 = vmatprep.subr.mxu0 0.0
      %670 = vmatpush1.msra.mxu0 0.0
      %671 = vmatprep.subr.mxu0 0.0
      %672 = vmatpush1.msra.mxu0 0.0
      %673 = vmatprep.subr.mxu0 0.0
      %674 = vmatpush1.msra.mxu0 0.0
      %675 = vmatprep.subr.mxu0 0.0
      %676 = vmatpush1.msra.mxu0 0.0
      %677 = vmatprep.subr.mxu0 0.0
      %678 = vmatpush1.msra.mxu0 0.0
      %679 = vmatprep.subr.mxu0 0.0
      %680 = vmatpush1.msra.mxu0 0.0
      %681 = vmatprep.subr.mxu0 0.0
      %682 = vmatpush1.msra.mxu0 0.0
      %683 = vmatprep.subr.mxu0 0.0
      %684 = vmatpush1.msra.mxu0 0.0
      %685 = vmatprep.subr.mxu0 0.0
      %686 = vmatpush1.msra.mxu0 0.0
      %687 = vmatprep.subr.mxu0 0.0
      %688 = vmatpush1.msra.mxu0 0.0
      %689 = vmatprep.subr.mxu0 0.0
      %690 = vmatpush1.msra.mxu0 0.0
      %691 = vmatprep.subr.mxu0 0.0
      %692 = vmatpush1.msra.mxu0 0.0
      %693 = vmatprep.subr.mxu0 0.0
      %694 = vmatpush1.msra.mxu0 0.0
      %695 = vmatprep.subr.mxu0 0.0
      %696 = vmatpush1.msra.mxu0 0.0
      %697 = vmatprep.subr.mxu0 0.0
      %698 = vmatpush1.msra.mxu0 0.0
      %699 = vmatprep.subr.mxu0 0.0
      %700 = vmatpush1.msra.mxu0 0.0
      %701 = vmatprep.mubr.f32.mxu0 0.0
      %702 = vmatmul.mubr.f32.gmra.mrb[0].mxu0 %v623
      %v703 = vpop.f32.mrb[0].mxu0
      %v704 = vadd.f32 0.0, %v703
      %v705 = vpop.f32.mrb[0].mxu0
      %706 = vmatprep.mubr.f32.mxu0 0.0
      %707 = vmatmul.mubr.f32.gmra.mrb[0].mxu0 %v626
      %v708 = vpop.f32.mrb[0].mxu0
      %v709 = vadd.f32 0.0, %v708
      %v710 = vpop.f32.mrb[0].mxu0
      %711 = vmatprep.mubr.f32.mxu0 0.0
      %712 = vmatmul.mubr.f32.gmra.mrb[0].mxu0 %v629
      %v713 = vpop.f32.mrb[0].mxu0
      %v714 = vadd.f32 0.0, %v713
      %v715 = vpop.f32.mrb[0].mxu0
      %716 = vmatprep.mubr.f32.mxu0 0.0
      %717 = vmatmul.mubr.f32.gmra.mrb[0].mxu0 %v632
      %v718 = vpop.f32.mrb[0].mxu0
      %v719 = vadd.f32 0.0, %v718
      %v720 = vpop.f32.mrb[0].mxu0
      %721 = vdwg.mxu0
      %v722 = vadd.f32 %v611, %v704
      %v723 = vadd.f32 %v612, %v709
      %v724 = vadd.f32 %v613, %v714
      %v725 = vadd.f32 %v614, %v719
      %v726 = vld [vmem:[%s504 + $0x1] sm:$0xff]
      %v727 = vld [vmem:[%s504 + $0x11] sm:$0xff]
      %v728 = vld [vmem:[%s504 + $0x21] sm:$0xff]
      %v729 = vld [vmem:[%s504 + $0x31] sm:$0xff]
      %s730 = scalar_lea.vmem %s1, 20
      %v731 = vld [vmem:[%s730] sm:$0xf]
      %v733 = vsel %vm192, %v726, 0
      %v736 = vsel %vm192, %v727, 0
      %v739 = vsel %vm192, %v728, 0
      %v742 = vsel %vm192, %v729, 0
      %v745 = vsel %vm205, %v731, 0
      %747 = vmatprep.subr.mxu0 0.0
      %748 = vmatpush1.msra.mxu0 %v745
      %749 = vmatprep.subr.mxu0 0.0
      %750 = vmatpush1.msra.mxu0 0.0
      %751 = vmatprep.subr.mxu0 0.0
      %752 = vmatpush1.msra.mxu0 0.0
      %753 = vmatprep.subr.mxu0 0.0
      %754 = vmatpush1.msra.mxu0 0.0
      %755 = vmatprep.subr.mxu0 0.0
      %756 = vmatpush1.msra.mxu0 0.0
      %757 = vmatprep.subr.mxu0 0.0
      %758 = vmatpush1.msra.mxu0 0.0
      %759 = vmatprep.subr.mxu0 0.0
      %760 = vmatpush1.msra.mxu0 0.0
      %761 = vmatprep.subr.mxu0 0.0
      %762 = vmatpush1.msra.mxu0 0.0
      %763 = vmatprep.subr.mxu0 0.0
      %764 = vmatpush1.msra.mxu0 0.0
      %765 = vmatprep.subr.mxu0 0.0
      %766 = vmatpush1.msra.mxu0 0.0
      %767 = vmatprep.subr.mxu0 0.0
      %768 = vmatpush1.msra.mxu0 0.0
      %769 = vmatprep.subr.mxu0 0.0
      %770 = vmatpush1.msra.mxu0 0.0
      %771 = vmatprep.subr.mxu0 0.0
      %772 = vmatpush1.msra.mxu0 0.0
      %773 = vmatprep.subr.mxu0 0.0
      %774 = vmatpush1.msra.mxu0 0.0
      %775 = vmatprep.subr.mxu0 0.0
      %776 = vmatpush1.msra.mxu0 0.0
      %777 = vmatprep.subr.mxu0 0.0
      %778 = vmatpush1.msra.mxu0 0.0
      %779 = vmatprep.subr.mxu0 0.0
      %780 = vmatpush1.msra.mxu0 0.0
      %781 = vmatprep.subr.mxu0 0.0
      %782 = vmatpush1.msra.mxu0 0.0
      %783 = vmatprep.subr.mxu0 0.0
      %784 = vmatpush1.msra.mxu0 0.0
      %785 = vmatprep.subr.mxu0 0.0
      %786 = vmatpush1.msra.mxu0 0.0
      %787 = vmatprep.subr.mxu0 0.0
      %788 = vmatpush1.msra.mxu0 0.0
      %789 = vmatprep.subr.mxu0 0.0
      %790 = vmatpush1.msra.mxu0 0.0
      %791 = vmatprep.subr.mxu0 0.0
      %792 = vmatpush1.msra.mxu0 0.0
      %793 = vmatprep.subr.mxu0 0.0
      %794 = vmatpush1.msra.mxu0 0.0
      %795 = vmatprep.subr.mxu0 0.0
      %796 = vmatpush1.msra.mxu0 0.0
      %797 = vmatprep.subr.mxu0 0.0
      %798 = vmatpush1.msra.mxu0 0.0
      %799 = vmatprep.subr.mxu0 0.0
      %800 = vmatpush1.msra.mxu0 0.0
      %801 = vmatprep.subr.mxu0 0.0
      %802 = vmatpush1.msra.mxu0 0.0
      %803 = vmatprep.subr.mxu0 0.0
      %804 = vmatpush1.msra.mxu0 0.0
      %805 = vmatprep.subr.mxu0 0.0
      %806 = vmatpush1.msra.mxu0 0.0
      %807 = vmatprep.subr.mxu0 0.0
      %808 = vmatpush1.msra.mxu0 0.0
      %809 = vmatprep.subr.mxu0 0.0
      %810 = vmatpush1.msra.mxu0 0.0
      %811 = vmatprep.mubr.f32.mxu0 0.0
      %812 = vmatmul.mubr.f32.gmra.mrb[0].mxu0 %v733
      %v813 = vpop.f32.mrb[0].mxu0
      %v814 = vadd.f32 0.0, %v813
      %v815 = vpop.f32.mrb[0].mxu0
      %816 = vmatprep.mubr.f32.mxu0 0.0
      %817 = vmatmul.mubr.f32.gmra.mrb[0].mxu0 %v736
      %v818 = vpop.f32.mrb[0].mxu0
      %v819 = vadd.f32 0.0, %v818
      %v820 = vpop.f32.mrb[0].mxu0
      %821 = vmatprep.mubr.f32.mxu0 0.0
      %822 = vmatmul.mubr.f32.gmra.mrb[0].mxu0 %v739
      %v823 = vpop.f32.mrb[0].mxu0
      %v824 = vadd.f32 0.0, %v823
      %v825 = vpop.f32.mrb[0].mxu0
      %826 = vmatprep.mubr.f32.mxu0 0.0
      %827 = vmatmul.mubr.f32.gmra.mrb[0].mxu0 %v742
      %v828 = vpop.f32.mrb[0].mxu0
      %v829 = vadd.f32 0.0, %v828
      %v830 = vpop.f32.mrb[0].mxu0
      %831 = vdwg.mxu0
      %v832 = vadd.f32 %v722, %v814
      %v833 = vadd.f32 %v723, %v819
      %v834 = vadd.f32 %v724, %v824
      %v835 = vadd.f32 %v725, %v829
      %s836 = scalar_lea.vmem %s170, 16
      %v837 = vld [vmem:[%s836] sm:$0xff]
      %v838 = vld [vmem:[%s836 + $0x10] sm:$0xff]
      %v839 = vld [vmem:[%s836 + $0x20] sm:$0xff]
      %v840 = vld [vmem:[%s836 + $0x30] sm:$0xff]
      %s841 = scalar_lea.vmem %s1, 24
      %v842 = vld [vmem:[%s841] sm:$0xf]
      %v844 = vsel %vm192, %v837, 0
      %v847 = vsel %vm192, %v838, 0
      %v850 = vsel %vm192, %v839, 0
      %v853 = vsel %vm192, %v840, 0
      %v856 = vsel %vm205, %v842, 0
      %858 = vmatprep.subr.mxu0 0.0
      %859 = vmatpush1.msra.mxu0 %v856
      %860 = vmatprep.subr.mxu0 0.0
      %861 = vmatpush1.msra.mxu0 0.0
      %862 = vmatprep.subr.mxu0 0.0
      %863 = vmatpush1.msra.mxu0 0.0
      %864 = vmatprep.subr.mxu0 0.0
      %865 = vmatpush1.msra.mxu0 0.0
      %866 = vmatprep.subr.mxu0 0.0
      %867 = vmatpush1.msra.mxu0 0.0
      %868 = vmatprep.subr.mxu0 0.0
      %869 = vmatpush1.msra.mxu0 0.0
      %870 = vmatprep.subr.mxu0 0.0
      %871 = vmatpush1.msra.mxu0 0.0
      %872 = vmatprep.subr.mxu0 0.0
      %873 = vmatpush1.msra.mxu0 0.0
      %874 = vmatprep.subr.mxu0 0.0
      %875 = vmatpush1.msra.mxu0 0.0
      %876 = vmatprep.subr.mxu0 0.0
      %877 = vmatpush1.msra.mxu0 0.0
      %878 = vmatprep.subr.mxu0 0.0
      %879 = vmatpush1.msra.mxu0 0.0
      %880 = vmatprep.subr.mxu0 0.0
      %881 = vmatpush1.msra.mxu0 0.0
      %882 = vmatprep.subr.mxu0 0.0
      %883 = vmatpush1.msra.mxu0 0.0
      %884 = vmatprep.subr.mxu0 0.0
      %885 = vmatpush1.msra.mxu0 0.0
      %886 = vmatprep.subr.mxu0 0.0
      %887 = vmatpush1.msra.mxu0 0.0
      %888 = vmatprep.subr.mxu0 0.0
      %889 = vmatpush1.msra.mxu0 0.0
      %890 = vmatprep.subr.mxu0 0.0
      %891 = vmatpush1.msra.mxu0 0.0
      %892 = vmatprep.subr.mxu0 0.0
      %893 = vmatpush1.msra.mxu0 0.0
      %894 = vmatprep.subr.mxu0 0.0
      %895 = vmatpush1.msra.mxu0 0.0
      %896 = vmatprep.subr.mxu0 0.0
      %897 = vmatpush1.msra.mxu0 0.0
      %898 = vmatprep.subr.mxu0 0.0
      %899 = vmatpush1.msra.mxu0 0.0
      %900 = vmatprep.subr.mxu0 0.0
      %901 = vmatpush1.msra.mxu0 0.0
      %902 = vmatprep.subr.mxu0 0.0
      %903 = vmatpush1.msra.mxu0 0.0
      %904 = vmatprep.subr.mxu0 0.0
      %905 = vmatpush1.msra.mxu0 0.0
      %906 = vmatprep.subr.mxu0 0.0
      %907 = vmatpush1.msra.mxu0 0.0
      %908 = vmatprep.subr.mxu0 0.0
      %909 = vmatpush1.msra.mxu0 0.0
      %910 = vmatprep.subr.mxu0 0.0
      %911 = vmatpush1.msra.mxu0 0.0
      %912 = vmatprep.subr.mxu0 0.0
      %913 = vmatpush1.msra.mxu0 0.0
      %914 = vmatprep.subr.mxu0 0.0
      %915 = vmatpush1.msra.mxu0 0.0
      %916 = vmatprep.subr.mxu0 0.0
      %917 = vmatpush1.msra.mxu0 0.0
      %918 = vmatprep.subr.mxu0 0.0
      %919 = vmatpush1.msra.mxu0 0.0
      %920 = vmatprep.subr.mxu0 0.0
      %921 = vmatpush1.msra.mxu0 0.0
      %922 = vmatprep.mubr.f32.mxu0 0.0
      %923 = vmatmul.mubr.f32.gmra.mrb[0].mxu0 %v844
      %v924 = vpop.f32.mrb[0].mxu0
      %v925 = vadd.f32 0.0, %v924
      %v926 = vpop.f32.mrb[0].mxu0
      %927 = vmatprep.mubr.f32.mxu0 0.0
      %928 = vmatmul.mubr.f32.gmra.mrb[0].mxu0 %v847
      %v929 = vpop.f32.mrb[0].mxu0
      %v930 = vadd.f32 0.0, %v929
      %v931 = vpop.f32.mrb[0].mxu0
      %932 = vmatprep.mubr.f32.mxu0 0.0
      %933 = vmatmul.mubr.f32.gmra.mrb[0].mxu0 %v850
      %v934 = vpop.f32.mrb[0].mxu0
      %v935 = vadd.f32 0.0, %v934
      %v936 = vpop.f32.mrb[0].mxu0
      %937 = vmatprep.mubr.f32.mxu0 0.0
      %938 = vmatmul.mubr.f32.gmra.mrb[0].mxu0 %v853
      %v939 = vpop.f32.mrb[0].mxu0
      %v940 = vadd.f32 0.0, %v939
      %v941 = vpop.f32.mrb[0].mxu0
      %942 = vdwg.mxu0
      %v943 = vadd.f32 %v832, %v925
      %v944 = vadd.f32 %v833, %v930
      %v945 = vadd.f32 %v834, %v935
      %v946 = vadd.f32 %v835, %v940
      %s947 = scalar_lea.vmem %s170, 96
      %v948 = vld [vmem:[%s947] sm:$0xff]
      %v949 = vld [vmem:[%s947 + $0x10] sm:$0xff]
      %v950 = vld [vmem:[%s947 + $0x20] sm:$0xff]
      %v951 = vld [vmem:[%s947 + $0x30] sm:$0xff]
      %s952 = scalar_lea.vmem %s1, 28
      %v953 = vld [vmem:[%s952] sm:$0xf]
      %v955 = vsel %vm192, %v948, 0
      %v958 = vsel %vm192, %v949, 0
      %v961 = vsel %vm192, %v950, 0
      %v964 = vsel %vm192, %v951, 0
      %v967 = vsel %vm205, %v953, 0
      %969 = vmatprep.subr.mxu0 0.0
      %970 = vmatpush1.msra.mxu0 %v967
      %971 = vmatprep.subr.mxu0 0.0
      %972 = vmatpush1.msra.mxu0 0.0
      %973 = vmatprep.subr.mxu0 0.0
      %974 = vmatpush1.msra.mxu0 0.0
      %975 = vmatprep.subr.mxu0 0.0
      %976 = vmatpush1.msra.mxu0 0.0
      %977 = vmatprep.subr.mxu0 0.0
      %978 = vmatpush1.msra.mxu0 0.0
      %979 = vmatprep.subr.mxu0 0.0
      %980 = vmatpush1.msra.mxu0 0.0
      %981 = vmatprep.subr.mxu0 0.0
      %982 = vmatpush1.msra.mxu0 0.0
      %983 = vmatprep.subr.mxu0 0.0
      %984 = vmatpush1.msra.mxu0 0.0
      %985 = vmatprep.subr.mxu0 0.0
      %986 = vmatpush1.msra.mxu0 0.0
      %987 = vmatprep.subr.mxu0 0.0
      %988 = vmatpush1.msra.mxu0 0.0
      %989 = vmatprep.subr.mxu0 0.0
      %990 = vmatpush1.msra.mxu0 0.0
      %991 = vmatprep.subr.mxu0 0.0
      %992 = vmatpush1.msra.mxu0 0.0
      %993 = vmatprep.subr.mxu0 0.0
      %994 = vmatpush1.msra.mxu0 0.0
      %995 = vmatprep.subr.mxu0 0.0
      %996 = vmatpush1.msra.mxu0 0.0
      %997 = vmatprep.subr.mxu0 0.0
      %998 = vmatpush1.msra.mxu0 0.0
      %999 = vmatprep.subr.mxu0 0.0
      %1000 = vmatpush1.msra.mxu0 0.0
      %1001 = vmatprep.subr.mxu0 0.0
      %1002 = vmatpush1.msra.mxu0 0.0
      %1003 = vmatprep.subr.mxu0 0.0
      %1004 = vmatpush1.msra.mxu0 0.0
      %1005 = vmatprep.subr.mxu0 0.0
      %1006 = vmatpush1.msra.mxu0 0.0
      %1007 = vmatprep.subr.mxu0 0.0
      %1008 = vmatpush1.msra.mxu0 0.0
      %1009 = vmatprep.subr.mxu0 0.0
      %1010 = vmatpush1.msra.mxu0 0.0
      %1011 = vmatprep.subr.mxu0 0.0
      %1012 = vmatpush1.msra.mxu0 0.0
      %1013 = vmatprep.subr.mxu0 0.0
      %1014 = vmatpush1.msra.mxu0 0.0
      %1015 = vmatprep.subr.mxu0 0.0
      %1016 = vmatpush1.msra.mxu0 0.0
      %1017 = vmatprep.subr.mxu0 0.0
      %1018 = vmatpush1.msra.mxu0 0.0
      %1019 = vmatprep.subr.mxu0 0.0
      %1020 = vmatpush1.msra.mxu0 0.0
      %1021 = vmatprep.subr.mxu0 0.0
      %1022 = vmatpush1.msra.mxu0 0.0
      %1023 = vmatprep.subr.mxu0 0.0
      %1024 = vmatpush1.msra.mxu0 0.0
      %1025 = vmatprep.subr.mxu0 0.0
      %1026 = vmatpush1.msra.mxu0 0.0
      %1027 = vmatprep.subr.mxu0 0.0
      %1028 = vmatpush1.msra.mxu0 0.0
      %1029 = vmatprep.subr.mxu0 0.0
      %1030 = vmatpush1.msra.mxu0 0.0
      %1031 = vmatprep.subr.mxu0 0.0
      %1032 = vmatpush1.msra.mxu0 0.0
      %1033 = vmatprep.mubr.f32.mxu0 0.0
      %1034 = vmatmul.mubr.f32.gmra.mrb[0].mxu0 %v955
      %v1035 = vpop.f32.mrb[0].mxu0
      %v1036 = vadd.f32 0.0, %v1035
      %v1037 = vpop.f32.mrb[0].mxu0
      %1038 = vmatprep.mubr.f32.mxu0 0.0
      %1039 = vmatmul.mubr.f32.gmra.mrb[0].mxu0 %v958
      %v1040 = vpop.f32.mrb[0].mxu0
      %v1041 = vadd.f32 0.0, %v1040
      %v1042 = vpop.f32.mrb[0].mxu0
      %1043 = vmatprep.mubr.f32.mxu0 0.0
      %1044 = vmatmul.mubr.f32.gmra.mrb[0].mxu0 %v961
      %v1045 = vpop.f32.mrb[0].mxu0
      %v1046 = vadd.f32 0.0, %v1045
      %v1047 = vpop.f32.mrb[0].mxu0
      %1048 = vmatprep.mubr.f32.mxu0 0.0
      %1049 = vmatmul.mubr.f32.gmra.mrb[0].mxu0 %v964
      %v1050 = vpop.f32.mrb[0].mxu0
      %v1051 = vadd.f32 0.0, %v1050
      %v1052 = vpop.f32.mrb[0].mxu0
      %1053 = vdwg.mxu0
      %v1054 = vadd.f32 %v943, %v1036
      %v1055 = vadd.f32 %v944, %v1041
      %v1056 = vadd.f32 %v945, %v1046
      %v1057 = vadd.f32 %v946, %v1051
      %v1058 = vld [vmem:[%s836 + $0x1] sm:$0xff]
      %v1059 = vld [vmem:[%s836 + $0x11] sm:$0xff]
      %v1060 = vld [vmem:[%s836 + $0x21] sm:$0xff]
      %v1061 = vld [vmem:[%s836 + $0x31] sm:$0xff]
      %s1062 = scalar_lea.vmem %s1, 32
      %v1063 = vld [vmem:[%s1062] sm:$0xf]
      %v1065 = vsel %vm192, %v1058, 0
      %v1068 = vsel %vm192, %v1059, 0
      %v1071 = vsel %vm192, %v1060, 0
      %v1074 = vsel %vm192, %v1061, 0
      %v1077 = vsel %vm205, %v1063, 0
      %1079 = vmatprep.subr.mxu0 0.0
      %1080 = vmatpush1.msra.mxu0 %v1077
      %1081 = vmatprep.subr.mxu0 0.0
      %1082 = vmatpush1.msra.mxu0 0.0
      %1083 = vmatprep.subr.mxu0 0.0
      %1084 = vmatpush1.msra.mxu0 0.0
      %1085 = vmatprep.subr.mxu0 0.0
      %1086 = vmatpush1.msra.mxu0 0.0
      %1087 = vmatprep.subr.mxu0 0.0
      %1088 = vmatpush1.msra.mxu0 0.0
      %1089 = vmatprep.subr.mxu0 0.0
      %1090 = vmatpush1.msra.mxu0 0.0
      %1091 = vmatprep.subr.mxu0 0.0
      %1092 = vmatpush1.msra.mxu0 0.0
      %1093 = vmatprep.subr.mxu0 0.0
      %1094 = vmatpush1.msra.mxu0 0.0
      %1095 = vmatprep.subr.mxu0 0.0
      %1096 = vmatpush1.msra.mxu0 0.0
      %1097 = vmatprep.subr.mxu0 0.0
      %1098 = vmatpush1.msra.mxu0 0.0
      %1099 = vmatprep.subr.mxu0 0.0
      %1100 = vmatpush1.msra.mxu0 0.0
      %1101 = vmatprep.subr.mxu0 0.0
      %1102 = vmatpush1.msra.mxu0 0.0
      %1103 = vmatprep.subr.mxu0 0.0
      %1104 = vmatpush1.msra.mxu0 0.0
      %1105 = vmatprep.subr.mxu0 0.0
      %1106 = vmatpush1.msra.mxu0 0.0
      %1107 = vmatprep.subr.mxu0 0.0
      %1108 = vmatpush1.msra.mxu0 0.0
      %1109 = vmatprep.subr.mxu0 0.0
      %1110 = vmatpush1.msra.mxu0 0.0
      %1111 = vmatprep.subr.mxu0 0.0
      %1112 = vmatpush1.msra.mxu0 0.0
      %1113 = vmatprep.subr.mxu0 0.0
      %1114 = vmatpush1.msra.mxu0 0.0
      %1115 = vmatprep.subr.mxu0 0.0
      %1116 = vmatpush1.msra.mxu0 0.0
      %1117 = vmatprep.subr.mxu0 0.0
      %1118 = vmatpush1.msra.mxu0 0.0
      %1119 = vmatprep.subr.mxu0 0.0
      %1120 = vmatpush1.msra.mxu0 0.0
      %1121 = vmatprep.subr.mxu0 0.0
      %1122 = vmatpush1.msra.mxu0 0.0
      %1123 = vmatprep.subr.mxu0 0.0
      %1124 = vmatpush1.msra.mxu0 0.0
      %1125 = vmatprep.subr.mxu0 0.0
      %1126 = vmatpush1.msra.mxu0 0.0
      %1127 = vmatprep.subr.mxu0 0.0
      %1128 = vmatpush1.msra.mxu0 0.0
      %1129 = vmatprep.subr.mxu0 0.0
      %1130 = vmatpush1.msra.mxu0 0.0
      %1131 = vmatprep.subr.mxu0 0.0
      %1132 = vmatpush1.msra.mxu0 0.0
      %1133 = vmatprep.subr.mxu0 0.0
      %1134 = vmatpush1.msra.mxu0 0.0
      %1135 = vmatprep.subr.mxu0 0.0
      %1136 = vmatpush1.msra.mxu0 0.0
      %1137 = vmatprep.subr.mxu0 0.0
      %1138 = vmatpush1.msra.mxu0 0.0
      %1139 = vmatprep.subr.mxu0 0.0
      %1140 = vmatpush1.msra.mxu0 0.0
      %1141 = vmatprep.subr.mxu0 0.0
      %1142 = vmatpush1.msra.mxu0 0.0
      %1143 = vmatprep.mubr.f32.mxu0 0.0
      %1144 = vmatmul.mubr.f32.gmra.mrb[0].mxu0 %v1065
      %v1145 = vpop.f32.mrb[0].mxu0
      %v1146 = vadd.f32 0.0, %v1145
      %v1147 = vpop.f32.mrb[0].mxu0
      %1148 = vmatprep.mubr.f32.mxu0 0.0
      %1149 = vmatmul.mubr.f32.gmra.mrb[0].mxu0 %v1068
      %v1150 = vpop.f32.mrb[0].mxu0
      %v1151 = vadd.f32 0.0, %v1150
      %v1152 = vpop.f32.mrb[0].mxu0
      %1153 = vmatprep.mubr.f32.mxu0 0.0
      %1154 = vmatmul.mubr.f32.gmra.mrb[0].mxu0 %v1071
      %v1155 = vpop.f32.mrb[0].mxu0
      %v1156 = vadd.f32 0.0, %v1155
      %v1157 = vpop.f32.mrb[0].mxu0
      %1158 = vmatprep.mubr.f32.mxu0 0.0
      %1159 = vmatmul.mubr.f32.gmra.mrb[0].mxu0 %v1074
      %v1160 = vpop.f32.mrb[0].mxu0
      %v1161 = vadd.f32 0.0, %v1160
      %v1162 = vpop.f32.mrb[0].mxu0
      %1163 = vdwg.mxu0
      %v1164 = vadd.f32 %v1054, %v1146
      %v1165 = vadd.f32 %v1055, %v1151
      %v1166 = vadd.f32 %v1056, %v1156
      %v1167 = vadd.f32 %v1057, %v1161
      %vm1168 = vcmask 64512
      %1169 = vst.msk [vmem:[%s179] sm:$0xff] %vm1168, %v1164
      %1170 = vst.msk [vmem:[%s179 + $0x8] sm:$0xff] %vm1168, %v1165
      %1171 = vst.msk [vmem:[%s179 + $0x10] sm:$0xff] %vm1168, %v1166
      %1172 = vst.msk [vmem:[%s179 + $0x18] sm:$0xff] %vm1168, %v1167
      %p1173 = scmp.lt.s32.totalorder %s17, 1
      %s1174 = scalar_select %p1173, %s17, 1
      %p1175 = scmp.lt.s32.totalorder %s18, 1
      %s1176 = scalar_select %p1175, %s18, 1
      %s1177 = smul.addr %s1176, 4
      %s1178 = smul.addr %s1174, 8
      %s1179 = sadd.s32 %s1177, %s1178
      %s1180 = smul.addr %s1179, 8
      %s1181 = scalar_lea.vmem %s2, %s1180
      // Predicated region
      $region29: #{tpu_custom_call.1} parent=27 // pred_check
        %p1182 = pneg %p94
      $region30: #{tpu_custom_call.1} parent=27 // pred_check_branch
        %1184 = sbr.rel (%p1182) target = $region32
      $region31: #{tpu_custom_call.1} parent=27 // pred_region
        _
      $region32: #{tpu_custom_call.1} parent=27 // pred_fallthru
        _
    $region28: #{tpu_custom_call.1} parent=5 // pred_fallthru
      _
    %p1185 = scmp.le.s32.totalorder 2, %s8
    // Predicated region
    $region33: #{tpu_custom_call.1} parent=5 // pred_check
      %p1186 = pneg %p1185
    $region34: #{tpu_custom_call.1} parent=5 // pred_check_branch
      %1188 = sbr.rel (%p1186) target = $region36
    $region35: #{tpu_custom_call.1} parent=5 // pred_region
      %s1189 = ssub.s32 %s8, 2
      // Predicated region
      $region37: #{tpu_custom_call.1} parent=35 // pred_check
        %p1190 = pneg %p100
      $region38: #{tpu_custom_call.1} parent=35 // pred_check_branch
        %1192 = sbr.rel (%p1190) target = $region40
      $region39: #{tpu_custom_call.1} parent=35 // pred_region
        %p1193 = scmp.lt.s32.totalorder %s19, 1
        %s1194 = scalar_select %p1193, %s19, 1
        %p1195 = scmp.lt.s32.totalorder %s20, 1
        %s1196 = scalar_select %p1195, %s20, 1
        %s1197 = smul.addr %s1196, 4
        %s1198 = smul.addr %s1194, 8
        %s1199 = sadd.s32 %s1197, %s1198
        %s1200 = smul.addr %s1199, 8
        %s1201 = scalar_lea.vmem %s2, %s1200
      $region40: #{tpu_custom_call.1} parent=35 // pred_fallthru
        _
    $region36: #{tpu_custom_call.1} parent=5 // pred_fallthru
      _
  $region6: #{tpu_custom_call.1} parent=0 // loop_footer
    %s12 = sadd.s32 1, %s8
  $region7: #{tpu_custom_call.1} parent=0 // loop_footer_branch
    %7 = sbr.rel target = $region3
  $region8: #{tpu_custom_call.1} parent=0 // loop_exit
    _

</llo_original>
